<compile_context>
chip_gen: v6e
topology: v6e:2x2x1
jax: 0.10.0
libtpu: 0.0.40
codegen_flags: <defaults>
</compile_context>

<pallas_src>
import functools

import jax
import jax.numpy as jnp
from jax import lax
from jax.experimental import pallas as pl
from jax.experimental.pallas import tpu as pltpu


def _pick_tile(n, candidates):
    """Largest candidate evenly dividing n, else the full extent (always legal)."""
    for c in candidates:
        if c <= n and n % c == 0:
            return c
    return n


# ---------------- Kernel 1: projection R = qk @ W_R (bf16 in, f32 acc) ----------------
def _proj_kernel(qk_ref, w_ref, r_ref):
    # qk_ref: (TS, D) bf16, w_ref: (D, D) bf16 -> r_ref: (TS, D) bf16
    r_ref[...] = jnp.dot(
        qk_ref[...], w_ref[...], preferred_element_type=jnp.float32
    ).astype(r_ref.dtype)


def project(qk_bf16, w_bf16):
    B, S, D = qk_bf16.shape
    ts = _pick_tile(S, (512, 256, 128, 64, 32, 16, 8))
    return pl.pallas_call(
        _proj_kernel,
        out_shape=jax.ShapeDtypeStruct((B, S, D), jnp.bfloat16),
        grid=(B, S // ts),
        in_specs=[
            pl.BlockSpec((pl.Squeezed(), ts, D), lambda b, s: (b, s, 0)),
            pl.BlockSpec((pl.Squeezed(), D, D), lambda b, s: (b, 0, 0)),
        ],
        out_specs=pl.BlockSpec((pl.Squeezed(), ts, D), lambda b, s: (b, s, 0)),
        compiler_params=pltpu.CompilerParams(
            dimension_semantics=("parallel", "parallel")
        ),
    )(qk_bf16, w_bf16)


# ---------------- Kernel 2: cosine k-means, streamed over N-tiles ----------------
def _kmeans_kernel(r_ref, c0_ref, idx_ref, c_sc, sum_sc, cnt_sc, *, k_real):
    it = pl.program_id(0)
    t = pl.program_id(1)
    n_tiles = pl.num_programs(1)

    # Seed centroids once, at the very first grid step.
    @pl.when(jnp.logical_and(it == 0, t == 0))
    def _():
        c_sc[...] = c0_ref[...].astype(jnp.float32)

    # Zero per-iteration accumulators at the start of each sweep over N.
    @pl.when(t == 0)
    def _():
        sum_sc[...] = jnp.zeros_like(sum_sc)
        cnt_sc[...] = jnp.zeros_like(cnt_sc)

    r_bf16 = r_ref[...]                              # (TN, D) bf16
    tn = r_bf16.shape[0]
    kp = c_sc.shape[0]

    # Cosine normalization: rsqrt goes to the EUP slot.
    r_f32 = r_bf16.astype(jnp.float32)
    rn = (r_f32 * lax.rsqrt(jnp.sum(r_f32 * r_f32, axis=-1, keepdims=True) + 1e-12)
          ).astype(jnp.bfloat16)
    c = c_sc[...]
    cn = (c * lax.rsqrt(jnp.sum(c * c, axis=-1, keepdims=True) + 1e-12)
          ).astype(jnp.bfloat16)

    # Cosine similarity (bf16 MXU, f32 accumulation); padded centroid columns
    # are masked so they can never win the argmin.
    sim = lax.dot_general(rn, cn, (((1,), (1,)), ((), ())),
                          preferred_element_type=jnp.float32)        # (TN, Kp)
    col_ids = lax.broadcasted_iota(jnp.int32, (tn, kp), 1)
    dist = jnp.where(col_ids < k_real, 1.0 - sim, 1e30)
    minv = jnp.min(dist, axis=-1, keepdims=True)
    idx = jnp.min(jnp.where(dist <= minv, col_ids, kp),
                  axis=-1, keepdims=True)                            # (TN, 1) int32

    # Lane-dense label writeback. The labels of the final iteration sweep are
    # the ones that persist, matching the reference (assignment computed with
    # the pre-final-update centroids).
    idx_ref[...] = jnp.transpose(idx, (1, 0))

    # Accumulate centroid sums (bf16 MXU, f32 acc) and counts (XLU reduction).
    a = (col_ids == idx).astype(jnp.bfloat16)                        # one-hot
    sum_sc[...] += lax.dot_general(a, r_bf16, (((0,), (0,)), ((), ())),
                                   preferred_element_type=jnp.float32)   # (Kp, D)
    cnt_sc[...] += jnp.sum(a.astype(jnp.float32), axis=0, keepdims=True)  # (1, Kp)

    # Centroid update at the end of the sweep (empty clusters keep old centroid).
    @pl.when(t == n_tiles - 1)
    def _():
        cnt_col = jnp.transpose(cnt_sc[...], (1, 0))                 # (Kp, 1)
        c_sc[...] = jnp.where(cnt_col > 0.0,
                              sum_sc[...] / jnp.maximum(cnt_col, 1.0),
                              c_sc[...])


def kmeans_assign(r, c0_padded, *, k_real, num_iters=20):
    n, d = r.shape
    kp = c0_padded.shape[0]
    tn = _pick_tile(n, (2048, 1024, 512, 256, 128))
    return pl.pallas_call(
        functools.partial(_kmeans_kernel, k_real=k_real),
        out_shape=jax.ShapeDtypeStruct((1, n), jnp.int32),
        grid=(num_iters, n // tn),
        in_specs=[
            pl.BlockSpec((tn, d), lambda it, t: (t, 0)),
            pl.BlockSpec((kp, d), lambda it, t: (0, 0)),
        ],
        out_specs=pl.BlockSpec((1, tn), lambda it, t: (0, t)),
        scratch_shapes=[
            pltpu.VMEM((kp, d), jnp.float32),   # centroids (persist across grid)
            pltpu.VMEM((kp, d), jnp.float32),   # per-iteration sums
            pltpu.VMEM((1, kp), jnp.float32),   # per-iteration counts
        ],
        compiler_params=pltpu.CompilerParams(
            dimension_semantics=("arbitrary", "arbitrary"),
            vmem_limit_bytes=48 * 1024 * 1024,
        ),
    )(r, c0_padded)


# ---------------- Kernel 3: routing mask (B, S, S), tiled over (S, S) ----------------
def _mask_kernel(row_ref, col_ref, out_ref):
    r = row_ref[...]                       # (1, 1, TQ) int32, lane-dense
    c = col_ref[...]                       # (1, 1, TK) int32, lane-dense
    eq = jnp.swapaxes(r, 1, 2) == c        # (1, TQ, 1) == (1, 1, TK) -> (1, TQ, TK)
    out_ref[...] = jnp.where(eq, 0.0, -10000.0).astype(jnp.float32)


def routing_mask(cluster_idx):
    b, s = cluster_idx.shape
    tq = _pick_tile(s, (256, 128, 64, 32, 16, 8))
    tk = _pick_tile(s, (1024, 512, 256, 128))
    ids = cluster_idx.reshape(b, 1, s)
    return pl.pallas_call(
        _mask_kernel,
        out_shape=jax.ShapeDtypeStruct((b, s, s), jnp.float32),
        grid=(b, s // tq, s // tk),
        in_specs=[
            pl.BlockSpec((1, 1, tq), lambda b_, q, k: (b_, 0, q)),
            pl.BlockSpec((1, 1, tk), lambda b_, q, k: (b_, 0, k)),
        ],
        out_specs=pl.BlockSpec((1, tq, tk), lambda b_, q, k: (b_, q, k)),
        compiler_params=pltpu.CompilerParams(
            dimension_semantics=("parallel", "parallel", "parallel"),
            vmem_limit_bytes=48 * 1024 * 1024,
        ),
    )(ids, ids)


# ---------------- Glue: parameter init + forward ----------------
def orthogonal_like_torch(key, batch, dim):
    # torch nn.init.orthogonal_ on a (B, D, D) tensor flattens trailing dims:
    # it orthogonalizes a (B, D*D) matrix (rows orthonormal), then reshapes.
    rows, cols = batch, dim * dim
    a = jax.random.normal(key, (cols, rows), jnp.float32)
    q, r = jnp.linalg.qr(a)
    d = jnp.sign(jnp.diagonal(r))
    q = q * d[None, :]
    return q.T.reshape(batch, dim, dim)


def routing_attention_forward(qk, n_heads, key):
    b, s, d = qk.shape
    k_w, k_init = jax.random.split(key)

    # torch casts to fp16; bf16 is the MXU-native operand dtype on TPU and the
    # matmuls accumulate in f32 inside the kernels. Downstream result is a hard
    # cluster-equality mask, so this does not change semantics.
    qk_bf16 = qk.astype(jnp.bfloat16)
    w_r = orthogonal_like_torch(k_w, b, d).astype(jnp.bfloat16)

    r3 = project(qk_bf16, w_r)                           # (B, S, D) bf16
    r = r3.reshape(b * s, d)

    k_real = int(s ** 0.5)
    kp = max(128, ((k_real + 127) // 128) * 128)          # pad K to lane-dense 128
    init_idx = jax.random.choice(k_init, b * s, shape=(k_real,), replace=False)
    c0 = jnp.zeros((kp, d), jnp.bfloat16).at[:k_real].set(r[init_idx])

    idx = kmeans_assign(r, c0, k_real=k_real, num_iters=20)   # (1, B*S) int32
    cluster_idx = idx.reshape(b, s)

    mask = routing_mask(cluster_idx)                     # (B, S, S) f32: 0 / -10000
    # Mask is identical across heads: expand with a broadcast instead of
    # materializing per head inside the kernel (H x less Pallas HBM traffic).
    return jnp.broadcast_to(mask[:, None, :, :], (b, n_heads, s, s))


if __name__ == "__main__":
    key = jax.random.PRNGKey(0)
    k_qk, k_fwd = jax.random.split(key)

    batch, seq_len, dim, n_heads = 2, 8, 32, 4
    qk = jax.random.normal(k_qk, (batch, seq_len, dim), jnp.float32)

    out = routing_attention_forward(qk, n_heads, k_fwd)
    out = jax.block_until_ready(out)

    assert out.shape == (batch, n_heads, seq_len, seq_len)
    assert out.dtype == jnp.float32
    # sanity: entries are exactly 0 or -10000, diagonal is 0 (same cluster as itself)
    assert bool(jnp.all((out == 0.0) | (out == -10000.0)))
    assert bool(jnp.all(jnp.diagonal(out, axis1=-2, axis2=-1) == 0.0))
    print("KERNEL_OK")
</pallas_src>

<mosaic_0001>
module attributes {stable_mosaic.version = 11 : i64} {
  func.func @_proj_kernel(%arg0: i32, %arg1: i32, %arg2: memref<1x8x32xbf16, #tpu.memory_space<vmem>>, %arg3: memref<1x32x32xbf16, #tpu.memory_space<vmem>>, %arg4: memref<1x8x32xbf16, #tpu.memory_space<vmem>>) attributes {dimension_semantics = [#tpu.dimension_semantics<parallel>, #tpu.dimension_semantics<parallel>], iteration_bounds = array<i64: 2, 1>, scalar_prefetch = 0 : i64, scratch_operands = 0 : i64, tpu.core_type = #tpu.core_type<tc>, window_params = [{transform_indices = @transform_0, window_bounds = array<i64: 1, 8, 32>}, {transform_indices = @transform_1, window_bounds = array<i64: 1, 32, 32>}, {transform_indices = @transform_2, window_bounds = array<i64: 1, 8, 32>}]} {
    %c0 = arith.constant 0 : index
    %c0_0 = arith.constant 0 : index
    %c0_1 = arith.constant 0 : index
    %0 = vector.load %arg2[%c0, %c0_0, %c0_1] : memref<1x8x32xbf16, #tpu.memory_space<vmem>>, vector<1x8x32xbf16>
    %1 = vector.shape_cast %0 : vector<1x8x32xbf16> to vector<8x32xbf16>
    %c0_2 = arith.constant 0 : index
    %c0_3 = arith.constant 0 : index
    %c0_4 = arith.constant 0 : index
    %2 = vector.load %arg3[%c0_2, %c0_3, %c0_4] : memref<1x32x32xbf16, #tpu.memory_space<vmem>>, vector<1x32x32xbf16>
    %3 = vector.shape_cast %2 : vector<1x32x32xbf16> to vector<32x32xbf16>
    %cst = arith.constant dense<0.000000e+00> : vector<8x32xf32>
    %4 = tpu.matmul %1, %3, %cst {dimension_numbers = #tpu.dot_dimension_numbers<[1], [0], [0], [1], [0, 0, 1, 1], [], []>} : vector<8x32xbf16>, vector<32x32xbf16>, vector<8x32xf32> -> vector<8x32xf32>
    %5 = arith.truncf %4 : vector<8x32xf32> to vector<8x32xbf16>
    %c0_5 = arith.constant 0 : index
    %c0_6 = arith.constant 0 : index
    %c0_7 = arith.constant 0 : index
    %6 = vector.load %arg4[%c0_5, %c0_6, %c0_7] : memref<1x8x32xbf16, #tpu.memory_space<vmem>>, vector<1x8x32xbf16>
    %7 = vector.shape_cast %6 : vector<1x8x32xbf16> to vector<8x32xbf16>
    %8 = vector.shape_cast %5 : vector<8x32xbf16> to vector<1x8x32xbf16>
    tpu.vector_store %arg4[%c0_5, %c0_6, %c0_7], %8 {strides = array<i32>} : memref<1x8x32xbf16, #tpu.memory_space<vmem>>, vector<1x8x32xbf16>,
    return
  }
  func.func @transform_0(%arg0: i32, %arg1: i32) -> (i32, i32, i32) {
    %c0_i32 = arith.constant 0 : i32
    %c0_i32_0 = arith.constant 0 : i32
    return %arg0, %arg1, %c0_i32 : i32, i32, i32
  }
  func.func @transform_1(%arg0: i32, %arg1: i32) -> (i32, i32, i32) {
    %c0_i32 = arith.constant 0 : i32
    %c0_i32_0 = arith.constant 0 : i32
    %c0_i32_1 = arith.constant 0 : i32
    return %arg0, %c0_i32, %c0_i32_0 : i32, i32, i32
  }
  func.func @transform_2(%arg0: i32, %arg1: i32) -> (i32, i32, i32) {
    %c0_i32 = arith.constant 0 : i32
    %c0_i32_0 = arith.constant 0 : i32
    return %arg0, %arg1, %c0_i32 : i32, i32, i32
  }
}

</mosaic_0001>

<llo_original>
// kernel: tpu_custom_call.1
$region0: #{tpu_custom_call.1}
  #allocation0 [shape = 'u32[]', space=smem, size = 0x4, offset = 0x4, fixed_abs, tag = 'smem constant byte address 0x4 - core index']
  #allocation1 [shape = 'u32[144,128]{1,0:T(1,128)}', space=vmem, size = 0x12000, scoped, tag = 'internal scratch']
  %s0 = inlined_call_operand.hbm [shape: bf16[2,8,32], index: 0, kind: input, shape index: {}]
  %s1 = inlined_call_operand.hbm [shape: bf16[2,32,32], index: 1, kind: input, shape index: {}]
  %s2 = inlined_call_operand.hbm [shape: bf16[2,8,32], index: 2, kind: output, shape index: {}]
  %s3 = sld [smem:[#allocation0]]
  $region49: #{tpu_custom_call.1} parent=0
    _
  %s5 = ssub.s32 1, %s3
  %s6 = scalar_select 0, %s5, %s3
  $region1: #{tpu_custom_call.1} parent=0
    #allocation2 [shape = 'u8[4096]{0}', space=vmem, size = 0x1000, scoped, tag = 'input window, operand 0']
    #allocation3 [shape = 's32[2]{0}', space=sflag, size = 0x8, scoped, tag = 'scoped memory for tpu_custom_call.1']
    #allocation4 [shape = 's32[2]{0}', space=sflag, size = 0x8, scoped, tag = 'scoped memory for tpu_custom_call.1']
    #allocation5 [shape = 'u8[16384]{0}', space=vmem, size = 0x4000, scoped, tag = 'input window, operand 1']
    #allocation6 [shape = 's32[2]{0}', space=sflag, size = 0x8, scoped, tag = 'scoped memory for tpu_custom_call.1']
    #allocation7 [shape = 'u8[4096]{0}', space=vmem, size = 0x1000, scoped, tag = 'output window, operand 0']
    %7 = vsyncpa [#allocation3], 0
    %s8 = scalar_lea.sflag [#allocation3], 1
    %9 = vsyncpa %s8, 0
    %10 = vsyncpa [#allocation6], 0
    %s11 = scalar_lea.sflag [#allocation6], 1
    %12 = vsyncpa %s11, 0
    %13 = vsyncpa [#allocation4], 0
    %s14 = scalar_lea.sflag [#allocation4], 1
    %15 = vsyncpa %s14, 0
    loop: start=0, step=1, limit=4
    $region2: #{tpu_custom_call.1} parent=1 // loop_pre_header
      _
    $region3: #{tpu_custom_call.1} parent=1 // loop_header
      %s17 = sphi 0, %s21
      %p18 = scmp.ge.s32.totalorder %s17, 4
      %s24 = sphi 0, %s36
      %s25 = sphi 0, %s32
      %s26 = sphi 0, %s24
      %s27 = sphi 0, %s25
      %s28 = sphi 0, %s26
      %s29 = sphi 0, %s27
      %s41 = sphi 0, %s43
      %s44 = sphi 0, %s41
      %s45 = sphi 0, %s44
      %s61 = sphi 0, %s45
      %s67 = sphi 0, %s69
      %s70 = sphi 0, %s67
      %s71 = sphi 0, %s70
      %s87 = sphi 0, %s71
      %s95 = sphi 0, %s97
      %s98 = sphi 0, %s95
      %s99 = sphi 0, %s98
      %s115 = sphi 0, %s99
    $region4: #{tpu_custom_call.1} parent=1 // loop_header_branch
      %20 = sbr.rel (%p18) target = $region8
    $region5: #{tpu_custom_call.1} parent=1 // loop_body
      %s22 = ssub.s32 %s17, 1
      %s23 = ssub.s32 %s17, 2
      %s30 = sadd.s32 1, %s25
      %p31 = scmp.ge.s32.totalorder %s30, 1
      %s32 = scalar_select %p31, 0, %s30
      %s33 = sadd.s32 1, %s24
      %s34 = scalar_select %p31, %s33, %s24
      %p35 = scmp.ge.s32.totalorder %s34, 2
      %s36 = scalar_select %p35, 0, %s34
      %s37 = ssub.s32 %s24, %s36
      %s38 = ssub.s32 %s25, %s32
      %s39 = sor.u32 %s37, %s38
      %p40 = scmp.eq.s32.totalorder %s39, 0
      %s42 = sadd.s32 %s41, 1
      %s43 = scalar_select %p40, %s41, %s42
      %p46 = pneg %p40
      %p47 = scmp.eq.s32.totalorder %s17, 1
      %p48 = por %p46, %p47
      %p49 = scmp.ne.s32.totalorder %s41, %s44
      %p50 = scmp.eq.s32.totalorder %s17, 0
      %p51 = por %p49, %p50
      %p52 = scmp.ne.s32.totalorder %s41, %s44
      %p53 = scmp.eq.s32.totalorder %s22, 1
      %p54 = por %p52, %p53
      %p55 = scmp.ne.s32.totalorder %s44, %s45
      %p56 = scmp.eq.s32.totalorder %s22, 0
      %p57 = por %p55, %p56
      %p58 = scmp.ne.s32.totalorder %s44, %s45
      %p59 = scmp.eq.s32.totalorder %s23, 1
      %p60 = por %p58, %p59
      %p62 = scmp.ne.s32.totalorder %s45, %s61
      %p63 = scmp.eq.s32.totalorder %s23, 0
      %p64 = por %p62, %p63
      %s65 = ssub.s32 %s24, %s36
      %p66 = scmp.eq.s32.totalorder %s65, 0
      %s68 = sadd.s32 %s67, 1
      %s69 = scalar_select %p66, %s67, %s68
      %p72 = pneg %p66
      %p73 = scmp.eq.s32.totalorder %s17, 1
      %p74 = por %p72, %p73
      %p75 = scmp.ne.s32.totalorder %s67, %s70
      %p76 = scmp.eq.s32.totalorder %s17, 0
      %p77 = por %p75, %p76
      %p78 = scmp.ne.s32.totalorder %s67, %s70
      %p79 = scmp.eq.s32.totalorder %s22, 1
      %p80 = por %p78, %p79
      %p81 = scmp.ne.s32.totalorder %s70, %s71
      %p82 = scmp.eq.s32.totalorder %s22, 0
      %p83 = por %p81, %p82
      %p84 = scmp.ne.s32.totalorder %s70, %s71
      %p85 = scmp.eq.s32.totalorder %s23, 1
      %p86 = por %p84, %p85
      %p88 = scmp.ne.s32.totalorder %s71, %s87
      %p89 = scmp.eq.s32.totalorder %s23, 0
      %p90 = por %p88, %p89
      %s91 = ssub.s32 %s24, %s36
      %s92 = ssub.s32 %s25, %s32
      %s93 = sor.u32 %s91, %s92
      %p94 = scmp.eq.s32.totalorder %s93, 0
      %s96 = sadd.s32 %s95, 1
      %s97 = scalar_select %p94, %s95, %s96
      %p100 = pneg %p94
      %p101 = scmp.eq.s32.totalorder %s17, 1
      %p102 = por %p100, %p101
      %p103 = scmp.ne.s32.totalorder %s95, %s98
      %p104 = scmp.eq.s32.totalorder %s17, 0
      %p105 = por %p103, %p104
      %p106 = scmp.ne.s32.totalorder %s95, %s98
      %p107 = scmp.eq.s32.totalorder %s22, 1
      %p108 = por %p106, %p107
      %p109 = scmp.ne.s32.totalorder %s98, %s99
      %p110 = scmp.eq.s32.totalorder %s22, 0
      %p111 = por %p109, %p110
      %p112 = scmp.ne.s32.totalorder %s98, %s99
      %p113 = scmp.eq.s32.totalorder %s23, 1
      %p114 = por %p112, %p113
      %p116 = scmp.ne.s32.totalorder %s99, %s115
      %p117 = scmp.eq.s32.totalorder %s23, 0
      %p118 = por %p116, %p117
      %p119 = scmp.le.s32.totalorder 1, %s17
      %p120 = scmp.lt.s32.totalorder %s17, 3
      %p121 = pnand %p119, %p120
      %p122 = pneg %p121
      // Predicated region
      $region9: #{tpu_custom_call.1} parent=5 // pred_check
        _
      $region10: #{tpu_custom_call.1} parent=5 // pred_check_branch
        %124 = sbr.rel (%p121) target = $region12
      $region11: #{tpu_custom_call.1} parent=5 // pred_region
        %s125 = ssub.s32 %s17, 1
      $region12: #{tpu_custom_call.1} parent=5 // pred_fallthru
        _
      %p126 = scmp.lt.s32.totalorder %s17, 2
      // Predicated region
      $region13: #{tpu_custom_call.1} parent=5 // pred_check
        %p127 = pneg %p126
      $region14: #{tpu_custom_call.1} parent=5 // pred_check_branch
        %129 = sbr.rel (%p127) target = $region16
      $region15: #{tpu_custom_call.1} parent=5 // pred_region
        // Predicated region
        $region17: #{tpu_custom_call.1} parent=15 // pred_check
          %p130 = pneg %p51
        $region18: #{tpu_custom_call.1} parent=15 // pred_check_branch
          %132 = sbr.rel (%p130) target = $region20
        $region19: #{tpu_custom_call.1} parent=15 // pred_region
          %s133 = sand.u32 %s41, 1
          %s134 = scalar_lea.sflag [#allocation3], %s133
          %s135 = sand.u32 %s41, 1
          %s136 = smul.addr %s135, 4
          %s137 = scalar_lea.vmem [#allocation2], %s136
          %s139 = ssub.s32 64, 64
          %140 = vsyncadd %s134, %s139
          %s141 = sadd.s32 %s25, %s24
          %s142 = smul.addr %s141, 64
          %s143 = scalar_lea.hbm %s0, %s142
          %s145 = sshll.u32 %s137, 4
          %s146 = int_to_ptr.vmem [resolvable:$true] %s145
          %148 = dma.hbm_to_vmem [thread:$0]  %s143, 64, %s146, %s134
        $region20: #{tpu_custom_call.1} parent=15 // pred_fallthru
          _
        // Predicated region
        $region21: #{tpu_custom_call.1} parent=15 // pred_check
          %p149 = pneg %p77
        $region22: #{tpu_custom_call.1} parent=15 // pred_check_branch
          %151 = sbr.rel (%p149) target = $region24
        $region23: #{tpu_custom_call.1} parent=15 // pred_region
          %s152 = sand.u32 %s67, 1
          %s153 = scalar_lea.sflag [#allocation6], %s152
          %s154 = sand.u32 %s67, 1
          %s155 = smul.addr %s154, 16
          %s156 = scalar_lea.vmem [#allocation5], %s155
          %s158 = ssub.s32 256, 256
          %159 = vsyncadd %s153, %s158
          %s160 = smul.addr %s24, 4
          %s161 = smul.addr %s160, 64
          %s162 = scalar_lea.hbm %s1, %s161
          %s163 = sshll.u32 %s156, 4
          %s164 = int_to_ptr.vmem [resolvable:$true] %s163
          %169 = dma.hbm_to_vmem [thread:$0]  %s162, 256, %s164, %s153, 64, 64, 4
        $region24: #{tpu_custom_call.1} parent=15 // pred_fallthru
          _
      $region16: #{tpu_custom_call.1} parent=5 // pred_fallthru
        _
      %p170 = scmp.le.s32.totalorder 1, %s17
      %p171 = scmp.lt.s32.totalorder %s17, 3
      %p172 = pnand %p170, %p171
      %p173 = pneg %p172
      // Predicated region
      $region25: #{tpu_custom_call.1} parent=5 // pred_check
        _
      $region26: #{tpu_custom_call.1} parent=5 // pred_check_branch
        %175 = sbr.rel (%p172) target = $region28
      $region27: #{tpu_custom_call.1} parent=5 // pred_region
        %s176 = ssub.s32 %s17, 1
        %s177 = sand.u32 %s44, 1
        %s178 = scalar_lea.sflag [#allocation3], %s177
        %s179 = sand.u32 %s44, 1
        %s180 = smul.addr %s179, 4
        %s181 = scalar_lea.vmem [#allocation2], %s180
        // Predicated region
        $region29: #{tpu_custom_call.1} parent=27 // pred_check
          %p182 = pneg %p57
        $region30: #{tpu_custom_call.1} parent=27 // pred_check_branch
          %184 = sbr.rel (%p182) target = $region32
        $region31: #{tpu_custom_call.1} parent=27 // pred_region
          %185 = dma.done %s178, 64
        $region32: #{tpu_custom_call.1} parent=27 // pred_fallthru
          _
        %s186 = sand.u32 %s70, 1
        %s187 = scalar_lea.sflag [#allocation6], %s186
        %s188 = sand.u32 %s70, 1
        %s189 = smul.addr %s188, 16
        %s190 = scalar_lea.vmem [#allocation5], %s189
        // Predicated region
        $region33: #{tpu_custom_call.1} parent=27 // pred_check
          %p191 = pneg %p83
        $region34: #{tpu_custom_call.1} parent=27 // pred_check_branch
          %193 = sbr.rel (%p191) target = $region36
        $region35: #{tpu_custom_call.1} parent=27 // pred_region
          %194 = dma.done %s187, 256
        $region36: #{tpu_custom_call.1} parent=27 // pred_fallthru
          _
        %s195 = sand.u32 %s44, 1
        %s196 = scalar_lea.sflag [#allocation3], %s195
        %s197 = sand.u32 %s44, 1
        %s198 = smul.addr %s197, 4
        %s199 = scalar_lea.vmem [#allocation2], %s198
        %p200 = pneg %p57
        %p201 = pneg %p54
        %s202 = sand.u32 %s70, 1
        %s203 = scalar_lea.sflag [#allocation6], %s202
        %s204 = sand.u32 %s70, 1
        %s205 = smul.addr %s204, 16
        %s206 = scalar_lea.vmem [#allocation5], %s205
        %p207 = pneg %p83
        %p208 = pneg %p80
        %p209 = pneg %p111
        %p210 = pneg %p108
        %s211 = sand.u32 %s98, 1
        %s212 = scalar_lea.sflag [#allocation4], %s211
        %s213 = sand.u32 %s98, 1
        %s214 = smul.addr %s213, 4
        %s215 = scalar_lea.vmem [#allocation7], %s214
        %v217 = vld [vmem:[%s181] sm:$0xf]
        %v218 = vld [vmem:[%s190] sm:$0xf]
        %v219 = vld [vmem:[%s190 + $0x4] sm:$0xf]
        %v220 = vld [vmem:[%s190 + $0x8] sm:$0xf]
        %v221 = vld [vmem:[%s190 + $0xc] sm:$0xf]
        %v226 = vunpack.c.l.b16 %v218
        %v227 = vunpack.c.l.b16 %v219
        %v228 = vunpack.c.l.b16 %v220
        %v229 = vunpack.c.l.b16 %v221
        %v230 = vpack.c.b16 %v227, %v226
        %v231 = vpack.c.b16 %v229, %v228
        %vm234 = vcmask 261120
        %v236 = vsel %vm234, %v217, 0
        %238 = vmatprep.subr.bf16.mxu0 0
        %239 = vmatpush1.bf16.msra.mxu0 0
        %240 = vmatprep.subr.bf16.mxu0 0
        %241 = vmatpush1.bf16.msra.mxu0 0
        %242 = vmatprep.subr.bf16.mxu0 0
        %243 = vmatpush1.bf16.msra.mxu0 0
        %244 = vmatprep.subr.bf16.mxu0 0
        %245 = vmatpush1.bf16.msra.mxu0 0
        %246 = vmatprep.subr.bf16.mxu0 0
        %247 = vmatpush1.bf16.msra.mxu0 0
        %248 = vmatprep.subr.bf16.mxu0 0
        %249 = vmatpush1.bf16.msra.mxu0 0
        %250 = vmatprep.subr.bf16.mxu0 0
        %251 = vmatpush1.bf16.msra.mxu0 %v231
        %252 = vmatprep.subr.bf16.mxu0 0
        %253 = vmatpush1.bf16.msra.mxu0 %v230
        %254 = vmatprep.subr.bf16.mxu0 0
        %255 = vmatpush2.bf16.msra.mxu0 0
        %256 = vmatprep.subr.bf16.mxu0 0
        %257 = vmatpush2.bf16.msra.mxu0 0
        %258 = vmatprep.subr.bf16.mxu0 0
        %259 = vmatpush2.bf16.msra.mxu0 0
        %260 = vmatprep.subr.bf16.mxu0 0
        %261 = vmatpush2.bf16.msra.mxu0 0
        %262 = vmatprep.subr.bf16.mxu0 0
        %263 = vmatpush2.bf16.msra.mxu0 0
        %264 = vmatprep.subr.bf16.mxu0 0
        %265 = vmatpush2.bf16.msra.mxu0 0
        %266 = vmatprep.subr.bf16.mxu0 0
        %267 = vmatpush2.bf16.msra.mxu0 0
        %268 = vmatprep.subr.bf16.mxu0 0
        %269 = vmatpush2.bf16.msra.mxu0 0
        %270 = vmatprep.mubr.bf16.mxu0 0
        %271 = vmatmul.mubr.bf16.gmra.mxu0 %v236
        %v272 = vpop.f32.mrf.mxu0
        %v273 = vadd.f32 0.0, %v272
        %v274 = vpop.f32.mrf.mxu0
        %v275 = vpop.f32.mrf.mxu0
        %v276 = vpop.f32.mrf.mxu0
        %277 = vdwg.mxu0
        %v278 = vpack.c.bf16 %v273, %v273
        %vm279 = vcmask 257024
        %280 = vst.msk [vmem:[%s215] sm:$0xf] %vm279, %v278
        %s281 = sand.u32 %s98, 1
        %s282 = scalar_lea.sflag [#allocation4], %s281
        %s283 = sand.u32 %s98, 1
        %s284 = smul.addr %s283, 4
        %s285 = scalar_lea.vmem [#allocation7], %s284
        // Predicated region
        $region37: #{tpu_custom_call.1} parent=27 // pred_check
          %p286 = pneg %p108
        $region38: #{tpu_custom_call.1} parent=27 // pred_check_branch
          %288 = sbr.rel (%p286) target = $region40
        $region39: #{tpu_custom_call.1} parent=27 // pred_region
          %s290 = ssub.s32 64, 64
          %291 = vsyncadd %s282, %s290
          %s292 = sadd.s32 %s27, %s26
          %s293 = smul.addr %s292, 64
          %s294 = scalar_lea.hbm %s2, %s293
          %s296 = sshll.u32 %s285, 4
          %s297 = int_to_ptr.vmem [resolvable:$true] %s296
          %299 = dma.vmem_to_hbm [thread:$0]  %s297, 64, %s294, %s282
        $region40: #{tpu_custom_call.1} parent=27 // pred_fallthru
          _
      $region28: #{tpu_custom_call.1} parent=5 // pred_fallthru
        _
      %p300 = scmp.le.s32.totalorder 2, %s17
      // Predicated region
      $region41: #{tpu_custom_call.1} parent=5 // pred_check
        %p301 = pneg %p300
      $region42: #{tpu_custom_call.1} parent=5 // pred_check_branch
        %303 = sbr.rel (%p301) target = $region44
      $region43: #{tpu_custom_call.1} parent=5 // pred_region
        %s304 = ssub.s32 %s17, 2
        // Predicated region
        $region45: #{tpu_custom_call.1} parent=43 // pred_check
          %p305 = pneg %p114
        $region46: #{tpu_custom_call.1} parent=43 // pred_check_branch
          %307 = sbr.rel (%p305) target = $region48
        $region47: #{tpu_custom_call.1} parent=43 // pred_region
          %s308 = sand.u32 %s99, 1
          %s309 = scalar_lea.sflag [#allocation4], %s308
          %s310 = sand.u32 %s99, 1
          %s311 = smul.addr %s310, 4
          %s312 = scalar_lea.vmem [#allocation7], %s311
          %313 = dma.done %s309, 64
        $region48: #{tpu_custom_call.1} parent=43 // pred_fallthru
          _
      $region44: #{tpu_custom_call.1} parent=5 // pred_fallthru
        _
    $region6: #{tpu_custom_call.1} parent=1 // loop_footer
      %s21 = sadd.s32 1, %s17
    $region7: #{tpu_custom_call.1} parent=1 // loop_footer_branch
      %16 = sbr.rel target = $region3
    $region8: #{tpu_custom_call.1} parent=1 // loop_exit
      _
    %314 = vsyncpa [#allocation3], 1
    %s315 = scalar_lea.sflag [#allocation3], 1
    %316 = vsyncpa %s315, 1
    %317 = vsyncpa [#allocation6], 1
    %s318 = scalar_lea.sflag [#allocation6], 1
    %319 = vsyncpa %s318, 1
    %320 = vsyncpa [#allocation4], 1
    %s321 = scalar_lea.sflag [#allocation4], 1
    %322 = vsyncpa %s321, 1

</llo_original>
